<compile_context>
chip_gen: v7x
topology: tpu7x:2x2x1
jax: 0.10.0
libtpu: 0.0.40
codegen_flags: <defaults>
</compile_context>

<pallas_src>
import functools

import jax
import jax.numpy as jnp
from jax.experimental import pallas as pl
from jax.experimental.pallas import tpu as pltpu

_LANE = 128
_SUBLANE = 8


def _argmax_channel_kernel(x_ref, o_ref):
    # x_ref: (1, C, TILE_ROWS, 128) block, o_ref: (1, TILE_ROWS, 128) int32 block
    C = x_ref.shape[1]
    is_float = jnp.issubdtype(x_ref.dtype, jnp.floating)

    # running (max, argidx), initialised from channel 0
    m = x_ref[0, 0]                                    # (TILE_ROWS, 128)
    idx = jnp.zeros(m.shape, dtype=jnp.int32)

    # C is static and modest; unrolled Python loop keeps each step as one
    # compare + two selects of dense VPU work per vreg.
    for c in range(1, C):
        xc = x_ref[0, c]                               # (TILE_ROWS, 128)
        if is_float:
            # torch parity: NaN counts as the max; the first NaN wins.
            take = (xc > m) | (jnp.isnan(xc) & ~jnp.isnan(m))
        else:
            take = xc > m                              # strict > => first max wins
        m = jnp.where(take, xc, m)
        idx = jnp.where(take, jnp.int32(c), idx)

    o_ref[0] = idx


@functools.partial(jax.jit, static_argnames=("dim",))
def argmax_pallas(x, dim=1):
    """Pallas equivalent of torch.argmax(x, dim=1) for NCHW input."""
    assert dim == 1, "only channel-axis argmax (dim=1) is implemented"
    N, C, H, W = x.shape
    HW = H * W
    itemsize = jnp.dtype(x.dtype).itemsize

    # ---- tile sizing -------------------------------------------------------
    # one input buffer = C * tile_rows * 128 * itemsize bytes; target ~4 MiB so
    # the double-buffered input (+ small int32 output buffers) fits the default
    # scoped VMEM on every generation (16 MiB v5e, 32 MiB v6e/v7x defaults).
    hw_rows = pl.cdiv(HW, _LANE)
    target_buf_bytes = 4 * 1024 * 1024
    max_rows = max(1, target_buf_bytes // (C * _LANE * itemsize))
    tile_rows = min(hw_rows, max_rows)
    if hw_rows >= _SUBLANE:
        tile_rows = max(_SUBLANE, (tile_rows // _SUBLANE) * _SUBLANE)  # sublane-aligned
        tile_rows = min(tile_rows, hw_rows)
    else:
        tile_rows = hw_rows                            # full-extent block (< 8 rows)

    num_tiles = pl.cdiv(hw_rows, tile_rows)
    padded_rows = num_tiles * tile_rows
    pad = padded_rows * _LANE - HW

    # Raise the scoped-VMEM limit only if an unusually large C forces the
    # double-buffered footprint past the smallest (v5e) default.
    in_buf = C * tile_rows * _LANE * itemsize
    out_buf = tile_rows * _LANE * 4
    need = 2 * (in_buf + out_buf) + (2 << 20)          # 2 MiB headroom
    vmem_limit = None if need <= (16 << 20) else min(need, 60 << 20)

    # ---- layout: (N, C, HW) -> (N, C, rows, 128) ---------------------------
    # aligned HW: pure metadata reshape (no copy); unaligned: one pad copy.
    x2 = x.reshape(N, C, HW)
    if pad:
        x2 = jnp.pad(x2, ((0, 0), (0, 0), (0, pad)))   # padded tail is sliced away
    x3 = x2.reshape(N, C, padded_rows, _LANE)

    cost = pl.CostEstimate(
        flops=2 * N * C * padded_rows * _LANE,
        transcendentals=0,
        bytes_accessed=(N * C * padded_rows * _LANE * itemsize
                        + N * padded_rows * _LANE * 4),
    )

    out = pl.pallas_call(
        _argmax_channel_kernel,
        out_shape=jax.ShapeDtypeStruct((N, padded_rows, _LANE), jnp.int32),
        grid=(N, num_tiles),
        in_specs=[pl.BlockSpec((1, C, tile_rows, _LANE),
                               lambda n, s: (n, 0, s, 0))],
        out_specs=pl.BlockSpec((1, tile_rows, _LANE),
                               lambda n, s: (n, s, 0)),
        compiler_params=pltpu.CompilerParams(
            dimension_semantics=("parallel", "parallel"),
            vmem_limit_bytes=vmem_limit),
        cost_estimate=cost,
    )(x3)

    return out.reshape(N, padded_rows * _LANE)[:, :HW].reshape(N, H, W)


if __name__ == "__main__":
    key = jax.random.PRNGKey(0)
    # small NCHW logits: batch=2, classes=4, spatial=16x16
    x = jax.random.normal(key, (2, 4, 16, 16), dtype=jnp.float32)

    y = argmax_pallas(x, dim=1)
    jax.block_until_ready(y)

    y_ref = jnp.argmax(x, axis=1)
    assert y.shape == (2, 16, 16)
    assert y.dtype == jnp.int32
    assert bool(jnp.all(y == y_ref)), "mismatch vs jnp.argmax reference"

    # second check: larger, non-128-aligned spatial size exercising tiling/padding
    x2 = jax.random.normal(jax.random.PRNGKey(1), (2, 19, 33, 65), dtype=jnp.float32)
    y2 = argmax_pallas(x2, dim=1)
    jax.block_until_ready(y2)
    assert bool(jnp.all(y2 == jnp.argmax(x2, axis=1))), "mismatch on tiled/padded case"

    print("KERNEL_OK")
</pallas_src>

<mosaic_0001>
module attributes {stable_mosaic.version = 11 : i64} {
  func.func @_argmax_channel_kernel(%arg0: i32, %arg1: i32, %arg2: memref<1x4x2x128xf32, #tpu.memory_space<vmem>>, %arg3: memref<1x2x128xi32, #tpu.memory_space<vmem>>) attributes {dimension_semantics = [#tpu.dimension_semantics<parallel>, #tpu.dimension_semantics<parallel>], iteration_bounds = array<i64: 2, 1>, scalar_prefetch = 0 : i64, scratch_operands = 0 : i64, tpu.core_type = #tpu.core_type<tc>, window_params = [{transform_indices = @transform_0, window_bounds = array<i64: 1, 4, 2, 128>}, {transform_indices = @transform_1, window_bounds = array<i64: 1, 2, 128>}]} {
    %c0 = arith.constant 0 : index
    %c0_0 = arith.constant 0 : index
    %c0_1 = arith.constant 0 : index
    %c0_2 = arith.constant 0 : index
    %0 = vector.load %arg2[%c0, %c0_0, %c0_1, %c0_2] : memref<1x4x2x128xf32, #tpu.memory_space<vmem>>, vector<1x1x2x128xf32>
    %1 = vector.shape_cast %0 : vector<1x1x2x128xf32> to vector<2x128xf32>
    %c0_i32 = arith.constant 0 : i32
    %2 = vector.broadcast %c0_i32 : i32 to vector<2x128xi32>
    %c0_3 = arith.constant 0 : index
    %c1 = arith.constant 1 : index
    %c0_4 = arith.constant 0 : index
    %c0_5 = arith.constant 0 : index
    %3 = vector.load %arg2[%c0_3, %c1, %c0_4, %c0_5] : memref<1x4x2x128xf32, #tpu.memory_space<vmem>>, vector<1x1x2x128xf32>
    %4 = vector.shape_cast %3 : vector<1x1x2x128xf32> to vector<2x128xf32>
    %5 = arith.cmpf ogt, %4, %1 : vector<2x128xf32>
    %6 = arith.cmpf one, %4, %4 : vector<2x128xf32>
    %7 = arith.cmpf one, %1, %1 : vector<2x128xf32>
    %cst = arith.constant dense<true> : vector<2x128xi1>
    %8 = arith.xori %7, %cst : vector<2x128xi1>
    %9 = arith.andi %6, %8 : vector<2x128xi1>
    %10 = arith.ori %5, %9 : vector<2x128xi1>
    %11 = arith.select %10, %4, %1 : vector<2x128xi1>, vector<2x128xf32>
    %c1_i32 = arith.constant 1 : i32
    %12 = vector.broadcast %c1_i32 : i32 to vector<2x128xi32>
    %13 = arith.select %10, %12, %2 : vector<2x128xi1>, vector<2x128xi32>
    %c0_6 = arith.constant 0 : index
    %c2 = arith.constant 2 : index
    %c0_7 = arith.constant 0 : index
    %c0_8 = arith.constant 0 : index
    %14 = vector.load %arg2[%c0_6, %c2, %c0_7, %c0_8] : memref<1x4x2x128xf32, #tpu.memory_space<vmem>>, vector<1x1x2x128xf32>
    %15 = vector.shape_cast %14 : vector<1x1x2x128xf32> to vector<2x128xf32>
    %16 = arith.cmpf ogt, %15, %11 : vector<2x128xf32>
    %17 = arith.cmpf one, %15, %15 : vector<2x128xf32>
    %18 = arith.cmpf one, %11, %11 : vector<2x128xf32>
    %cst_9 = arith.constant dense<true> : vector<2x128xi1>
    %19 = arith.xori %18, %cst_9 : vector<2x128xi1>
    %20 = arith.andi %17, %19 : vector<2x128xi1>
    %21 = arith.ori %16, %20 : vector<2x128xi1>
    %22 = arith.select %21, %15, %11 : vector<2x128xi1>, vector<2x128xf32>
    %c2_i32 = arith.constant 2 : i32
    %23 = vector.broadcast %c2_i32 : i32 to vector<2x128xi32>
    %24 = arith.select %21, %23, %13 : vector<2x128xi1>, vector<2x128xi32>
    %c0_10 = arith.constant 0 : index
    %c3 = arith.constant 3 : index
    %c0_11 = arith.constant 0 : index
    %c0_12 = arith.constant 0 : index
    %25 = vector.load %arg2[%c0_10, %c3, %c0_11, %c0_12] : memref<1x4x2x128xf32, #tpu.memory_space<vmem>>, vector<1x1x2x128xf32>
    %26 = vector.shape_cast %25 : vector<1x1x2x128xf32> to vector<2x128xf32>
    %27 = arith.cmpf ogt, %26, %22 : vector<2x128xf32>
    %28 = arith.cmpf one, %26, %26 : vector<2x128xf32>
    %29 = arith.cmpf one, %22, %22 : vector<2x128xf32>
    %cst_13 = arith.constant dense<true> : vector<2x128xi1>
    %30 = arith.xori %29, %cst_13 : vector<2x128xi1>
    %31 = arith.andi %28, %30 : vector<2x128xi1>
    %32 = arith.ori %27, %31 : vector<2x128xi1>
    %c3_i32 = arith.constant 3 : i32
    %33 = vector.broadcast %c3_i32 : i32 to vector<2x128xi32>
    %34 = arith.select %32, %33, %24 : vector<2x128xi1>, vector<2x128xi32>
    %c0_14 = arith.constant 0 : index
    %c0_15 = arith.constant 0 : index
    %c0_16 = arith.constant 0 : index
    %35 = vector.load %arg3[%c0_14, %c0_15, %c0_16] : memref<1x2x128xi32, #tpu.memory_space<vmem>>, vector<1x2x128xi32>
    %36 = vector.shape_cast %35 : vector<1x2x128xi32> to vector<2x128xi32>
    %37 = vector.shape_cast %34 : vector<2x128xi32> to vector<1x2x128xi32>
    tpu.vector_store %arg3[%c0_14, %c0_15, %c0_16], %37 {strides = array<i32>} : memref<1x2x128xi32, #tpu.memory_space<vmem>>, vector<1x2x128xi32>,
    return
  }
  func.func @transform_0(%arg0: i32, %arg1: i32) -> (i32, i32, i32, i32) {
    %c0_i32 = arith.constant 0 : i32
    %c0_i32_0 = arith.constant 0 : i32
    %c0_i32_1 = arith.constant 0 : i32
    return %arg0, %c0_i32, %arg1, %c0_i32_0 : i32, i32, i32, i32
  }
  func.func @transform_1(%arg0: i32, %arg1: i32) -> (i32, i32, i32) {
    %c0_i32 = arith.constant 0 : i32
    %c0_i32_0 = arith.constant 0 : i32
    return %arg0, %arg1, %c0_i32 : i32, i32, i32
  }
}

</mosaic_0001>

<llo_original>
// kernel: argmax_pallas.1
$region0: #{argmax_pallas.1}
  #allocation0 [shape = 'u32[]', space=smem, size = 0x4, offset = 0x4, fixed_abs, tag = 'smem constant byte address 0x4 - core index']
  #allocation1 [shape = 'u32[144,128]{1,0:T(1,128)}', space=vmem, size = 0x12000, scoped, tag = 'internal scratch']
  %s0 = inlined_call_operand.vmem [shape: f32[2,4,2,128], index: 0, kind: input, shape index: {}]
  %s1 = inlined_call_operand.vmem [shape: s32[2,2,128], index: 1, kind: output, shape index: {}]
  %s2 = sld [smem:[#allocation0]]
  $region37: #{argmax_pallas.1} parent=0
    _
  %s4 = ssub.s32 1, %s2
  %s5 = scalar_select 0, %s4, %s2
  loop: start=0, step=1, limit=4
  $region2: #{argmax_pallas.1} parent=0 // loop_pre_header
    _
  $region3: #{argmax_pallas.1} parent=0 // loop_header
    %s7 = sphi 0, %s11
    %p8 = scmp.ge.s32.totalorder %s7, 4
    %s14 = sphi 0, %s26
    %s15 = sphi 0, %s22
    %s16 = sphi 0, %s14
    %s17 = sphi 0, %s15
    %s18 = sphi 0, %s16
    %s19 = sphi 0, %s17
    %s31 = sphi 0, %s33
    %s34 = sphi 0, %s31
    %s35 = sphi 0, %s34
    %s51 = sphi 0, %s35
    %s59 = sphi 0, %s61
    %s62 = sphi 0, %s59
    %s63 = sphi 0, %s62
    %s79 = sphi 0, %s63
  $region4: #{argmax_pallas.1} parent=0 // loop_header_branch
    %10 = sbr.rel (%p8) target = $region8
  $region5: #{argmax_pallas.1} parent=0 // loop_body
    %s12 = ssub.s32 %s7, 1
    %s13 = ssub.s32 %s7, 2
    %s20 = sadd.s32 1, %s15
    %p21 = scmp.ge.s32.totalorder %s20, 1
    %s22 = scalar_select %p21, 0, %s20
    %s23 = sadd.s32 1, %s14
    %s24 = scalar_select %p21, %s23, %s14
    %p25 = scmp.ge.s32.totalorder %s24, 2
    %s26 = scalar_select %p25, 0, %s24
    %s27 = ssub.s32 %s14, %s26
    %s28 = ssub.s32 %s15, %s22
    %s29 = sor.u32 %s27, %s28
    %p30 = scmp.eq.s32.totalorder %s29, 0
    %s32 = sadd.s32 %s31, 1
    %s33 = scalar_select %p30, %s31, %s32
    %p36 = pneg %p30
    %p37 = scmp.eq.s32.totalorder %s7, 1
    %p38 = por %p36, %p37
    %p39 = scmp.ne.s32.totalorder %s31, %s34
    %p40 = scmp.eq.s32.totalorder %s7, 0
    %p41 = por %p39, %p40
    %p42 = scmp.ne.s32.totalorder %s31, %s34
    %p43 = scmp.eq.s32.totalorder %s12, 1
    %p44 = por %p42, %p43
    %p45 = scmp.ne.s32.totalorder %s34, %s35
    %p46 = scmp.eq.s32.totalorder %s12, 0
    %p47 = por %p45, %p46
    %p48 = scmp.ne.s32.totalorder %s34, %s35
    %p49 = scmp.eq.s32.totalorder %s13, 1
    %p50 = por %p48, %p49
    %p52 = scmp.ne.s32.totalorder %s35, %s51
    %p53 = scmp.eq.s32.totalorder %s13, 0
    %p54 = por %p52, %p53
    %s55 = ssub.s32 %s14, %s26
    %s56 = ssub.s32 %s15, %s22
    %s57 = sor.u32 %s55, %s56
    %p58 = scmp.eq.s32.totalorder %s57, 0
    %s60 = sadd.s32 %s59, 1
    %s61 = scalar_select %p58, %s59, %s60
    %p64 = pneg %p58
    %p65 = scmp.eq.s32.totalorder %s7, 1
    %p66 = por %p64, %p65
    %p67 = scmp.ne.s32.totalorder %s59, %s62
    %p68 = scmp.eq.s32.totalorder %s7, 0
    %p69 = por %p67, %p68
    %p70 = scmp.ne.s32.totalorder %s59, %s62
    %p71 = scmp.eq.s32.totalorder %s12, 1
    %p72 = por %p70, %p71
    %p73 = scmp.ne.s32.totalorder %s62, %s63
    %p74 = scmp.eq.s32.totalorder %s12, 0
    %p75 = por %p73, %p74
    %p76 = scmp.ne.s32.totalorder %s62, %s63
    %p77 = scmp.eq.s32.totalorder %s13, 1
    %p78 = por %p76, %p77
    %p80 = scmp.ne.s32.totalorder %s63, %s79
    %p81 = scmp.eq.s32.totalorder %s13, 0
    %p82 = por %p80, %p81
    %p83 = scmp.le.s32.totalorder 1, %s7
    %p84 = scmp.lt.s32.totalorder %s7, 3
    %p85 = pnand %p83, %p84
    %p86 = pneg %p85
    // Predicated region
    $region9: #{argmax_pallas.1} parent=5 // pred_check
      _
    $region10: #{argmax_pallas.1} parent=5 // pred_check_branch
      %88 = sbr.rel (%p85) target = $region12
    $region11: #{argmax_pallas.1} parent=5 // pred_region
      %s89 = ssub.s32 %s7, 1
    $region12: #{argmax_pallas.1} parent=5 // pred_fallthru
      _
    %p90 = scmp.lt.s32.totalorder %s7, 2
    // Predicated region
    $region13: #{argmax_pallas.1} parent=5 // pred_check
      %p91 = pneg %p90
    $region14: #{argmax_pallas.1} parent=5 // pred_check_branch
      %93 = sbr.rel (%p91) target = $region16
    $region15: #{argmax_pallas.1} parent=5 // pred_region
      // Predicated region
      $region17: #{argmax_pallas.1} parent=15 // pred_check
        %p94 = pneg %p41
      $region18: #{argmax_pallas.1} parent=15 // pred_check_branch
        %96 = sbr.rel (%p94) target = $region20
      $region19: #{argmax_pallas.1} parent=15 // pred_region
        %p97 = scmp.lt.s32.totalorder %s14, 1
        %s98 = scalar_select %p97, %s14, 1
        %p99 = scmp.lt.s32.totalorder %s15, 0
        %s100 = scalar_select %p99, %s15, 0
        %s101 = smul.addr %s98, 4
        %s102 = sadd.s32 %s100, %s101
        %s103 = smul.addr %s102, 2
        %s104 = scalar_lea.vmem %s0, %s103
      $region20: #{argmax_pallas.1} parent=15 // pred_fallthru
        _
    $region16: #{argmax_pallas.1} parent=5 // pred_fallthru
      _
    %p105 = scmp.le.s32.totalorder 1, %s7
    %p106 = scmp.lt.s32.totalorder %s7, 3
    %p107 = pnand %p105, %p106
    %p108 = pneg %p107
    // Predicated region
    $region21: #{argmax_pallas.1} parent=5 // pred_check
      _
    $region22: #{argmax_pallas.1} parent=5 // pred_check_branch
      %110 = sbr.rel (%p107) target = $region24
    $region23: #{argmax_pallas.1} parent=5 // pred_region
      %s111 = ssub.s32 %s7, 1
      %p112 = scmp.lt.s32.totalorder %s16, 1
      %s113 = scalar_select %p112, %s16, 1
      %p114 = scmp.lt.s32.totalorder %s17, 0
      %s115 = scalar_select %p114, %s17, 0
      %s116 = smul.addr %s113, 4
      %s117 = sadd.s32 %s115, %s116
      %s118 = smul.addr %s117, 2
      %s119 = scalar_lea.vmem %s0, %s118
      %p120 = pneg %p47
      %p121 = pneg %p44
      %p122 = pneg %p75
      %p123 = pneg %p72
      %p124 = scmp.lt.s32.totalorder %s16, 1
      %s125 = scalar_select %p124, %s16, 1
      %p126 = scmp.lt.s32.totalorder %s17, 0
      %s127 = scalar_select %p126, %s17, 0
      %s128 = sadd.s32 %s127, %s125
      %s129 = smul.addr %s128, 2
      %s130 = scalar_lea.vmem %s1, %s129
      %p131 = scmp.lt.s32.totalorder %s16, 1
      %s132 = scalar_select %p131, %s16, 1
      %p133 = scmp.lt.s32.totalorder %s17, 0
      %s134 = scalar_select %p133, %s17, 0
      %s135 = smul.addr %s132, 4
      %s136 = sadd.s32 %s134, %s135
      %s137 = smul.addr %s136, 2
      %s138 = scalar_lea.vmem %s0, %s137
      %p139 = scmp.lt.s32.totalorder %s16, 1
      %s140 = scalar_select %p139, %s16, 1
      %p141 = scmp.lt.s32.totalorder %s17, 0
      %s142 = scalar_select %p141, %s17, 0
      %s143 = sadd.s32 %s142, %s140
      %s144 = smul.addr %s143, 2
      %s145 = scalar_lea.vmem %s1, %s144
      %v146 = vld [vmem:[%s138] sm:$0x3]
      %s147 = scalar_lea.vmem %s138, 2
      %v148 = vld [vmem:[%s147] sm:$0x3]
      %vm149 = vcmp.gt.f32.partialorder %v148, %v146
      %vm150 = vcmp.ne.f32.partialorder %v148, %v148
      %vm151 = vcmp.ne.f32.partialorder %v146, %v146
      %vm152 = vmxor %vm151, 1
      %vm153 = vmand %vm150, %vm152
      %vm154 = vmor %vm149, %vm153
      %v155 = vsel %vm154, %v148, %v146
      %v156 = vsel %vm154, 1, 0
      %s157 = scalar_lea.vmem %s138, 4
      %v158 = vld [vmem:[%s157] sm:$0x3]
      %vm159 = vcmp.gt.f32.partialorder %v158, %v155
      %vm160 = vcmp.ne.f32.partialorder %v158, %v158
      %vm161 = vcmp.ne.f32.partialorder %v155, %v155
      %vm162 = vmxor %vm161, 1
      %vm163 = vmand %vm160, %vm162
      %vm164 = vmor %vm159, %vm163
      %v165 = vsel %vm164, %v158, %v155
      %v166 = vsel %vm164, 2, %v156
      %s167 = scalar_lea.vmem %s138, 6
      %v168 = vld [vmem:[%s167] sm:$0x3]
      %vm169 = vcmp.gt.f32.partialorder %v168, %v165
      %vm170 = vcmp.ne.f32.partialorder %v168, %v168
      %vm171 = vcmp.ne.f32.partialorder %v165, %v165
      %vm172 = vmxor %vm171, 1
      %vm173 = vmand %vm170, %vm172
      %vm174 = vmor %vm169, %vm173
      %v175 = vsel %vm174, 3, %v166
      %176 = vst [vmem:[%s145] sm:$0x3] %v175
      %p177 = scmp.lt.s32.totalorder %s16, 1
      %s178 = scalar_select %p177, %s16, 1
      %p179 = scmp.lt.s32.totalorder %s17, 0
      %s180 = scalar_select %p179, %s17, 0
      %s181 = sadd.s32 %s180, %s178
      %s182 = smul.addr %s181, 2
      %s183 = scalar_lea.vmem %s1, %s182
      // Predicated region
      $region25: #{argmax_pallas.1} parent=23 // pred_check
        %p184 = pneg %p72
      $region26: #{argmax_pallas.1} parent=23 // pred_check_branch
        %186 = sbr.rel (%p184) target = $region28
      $region27: #{argmax_pallas.1} parent=23 // pred_region
        _
      $region28: #{argmax_pallas.1} parent=23 // pred_fallthru
        _
    $region24: #{argmax_pallas.1} parent=5 // pred_fallthru
      _
    %p187 = scmp.le.s32.totalorder 2, %s7
    // Predicated region
    $region29: #{argmax_pallas.1} parent=5 // pred_check
      %p188 = pneg %p187
    $region30: #{argmax_pallas.1} parent=5 // pred_check_branch
      %190 = sbr.rel (%p188) target = $region32
    $region31: #{argmax_pallas.1} parent=5 // pred_region
      %s191 = ssub.s32 %s7, 2
      // Predicated region
      $region33: #{argmax_pallas.1} parent=31 // pred_check
        %p192 = pneg %p78
      $region34: #{argmax_pallas.1} parent=31 // pred_check_branch
        %194 = sbr.rel (%p192) target = $region36
      $region35: #{argmax_pallas.1} parent=31 // pred_region
        %p195 = scmp.lt.s32.totalorder %s18, 1
        %s196 = scalar_select %p195, %s18, 1
        %p197 = scmp.lt.s32.totalorder %s19, 0
        %s198 = scalar_select %p197, %s19, 0
        %s199 = sadd.s32 %s198, %s196
        %s200 = smul.addr %s199, 2
        %s201 = scalar_lea.vmem %s1, %s200
      $region36: #{argmax_pallas.1} parent=31 // pred_fallthru
        _
    $region32: #{argmax_pallas.1} parent=5 // pred_fallthru
      _
  $region6: #{argmax_pallas.1} parent=0 // loop_footer
    %s11 = sadd.s32 1, %s7
  $region7: #{argmax_pallas.1} parent=0 // loop_footer_branch
    %6 = sbr.rel target = $region3
  $region8: #{argmax_pallas.1} parent=0 // loop_exit
    _

</llo_original>
